<compile_context>
chip_gen: v6e
topology: v6e:2x2x1
jax: 0.10.0
libtpu: 0.0.40
codegen_flags: <defaults>
</compile_context>

<pallas_src>
import functools

import jax
import jax.numpy as jnp
from jax.experimental import pallas as pl
from jax.experimental.pallas import tpu as pltpu


def _diff_spectral_l1_kernel(x_ref, t_ref, valid_ref, num_ref, carry_ref):
    # x_ref, t_ref : (Bp, TK) f32 VMEM tiles of the padded inputs
    # valid_ref    : (Bp, 1)  i32 VMEM, number of valid diffs per row
    #                (= clamp(min(length, T) - 1, 0); 0 for padded rows)
    # num_ref      : (1, 1)   f32 SMEM output, running numerator sum
    # carry_ref    : (Bp, 1)  f32 VMEM scratch, last column of previous tile
    k = pl.program_id(0)

    @pl.when(k == 0)
    def _init():
        num_ref[0, 0] = 0.0
        carry_ref[...] = jnp.zeros_like(carry_ref)

    # Single error signal; (x[j+1]-x[j]) - (t[j+1]-t[j]) == d[j+1] - d[j].
    d = x_ref[...] - t_ref[...]                      # (Bp, TK)

    # rolled[:, c] = d[:, c-1] for c >= 1 (column 0 wraps; replaced by carry).
    rolled = pltpu.roll(d, shift=1, axis=1)          # XLU, full aligned vregs

    bp, tk = d.shape
    col = jax.lax.broadcasted_iota(jnp.int32, (bp, tk), 1)
    prev = jnp.where(col == 0, carry_ref[...], rolled)

    # Column c of this tile holds diff index (gcol - 1), gcol = k*TK + c.
    # Valid iff 1 <= gcol <= valid (also kills tile-0 column 0, padded rows,
    # padded columns and the wrapped roll column).
    gcol = col + k * tk
    mask = jnp.logical_and(gcol >= 1, gcol <= valid_ref[...])

    err = jnp.abs(d - prev)
    num_ref[0, 0] += jnp.sum(jnp.where(mask, err, 0.0))

    # Carry this tile's last column (== rolled[:, 0]) to the next grid step.
    carry_ref[...] = rolled[:, 0:1]


def _round_up(a: int, m: int) -> int:
    return (a + m - 1) // m * m


@functools.partial(jax.jit, static_argnames=("tile_t",))
def _diff_spectral_loss_impl(x, target, length, *, tile_t):
    B, T = x.shape

    # Per-row number of valid diff positions; denominator is pure scalar work.
    valid = jnp.maximum(jnp.minimum(length, T) - 1, 0)            # (B,) i32
    den = jnp.maximum(jnp.sum(valid).astype(jnp.float32), 1.0)

    # Pad batch to >=8 sublanes, time to a multiple of the lane tile.
    TK = min(tile_t, _round_up(T, 128))
    Tp = _round_up(T, TK)
    Bp = _round_up(max(B, 8), 8)

    xp = jnp.zeros((Bp, Tp), jnp.float32).at[:B, :T].set(x)
    tp = jnp.zeros((Bp, Tp), jnp.float32).at[:B, :T].set(target)
    validp = jnp.zeros((Bp, 1), jnp.int32).at[:B, 0].set(valid)

    num = pl.pallas_call(
        _diff_spectral_l1_kernel,
        out_shape=jax.ShapeDtypeStruct((1, 1), jnp.float32),
        grid=(Tp // TK,),
        in_specs=[
            pl.BlockSpec((Bp, TK), lambda k: (0, k)),
            pl.BlockSpec((Bp, TK), lambda k: (0, k)),
            pl.BlockSpec((Bp, 1), lambda k: (0, 0)),   # resident across grid
        ],
        out_specs=pl.BlockSpec(memory_space=pltpu.SMEM),
        scratch_shapes=[pltpu.VMEM((Bp, 1), jnp.float32)],
        compiler_params=pltpu.CompilerParams(
            # Sequential: carry + accumulator live across T tiles.
            dimension_semantics=("arbitrary",)),
        cost_estimate=pl.CostEstimate(
            flops=5 * Bp * Tp,
            transcendentals=0,
            bytes_accessed=2 * Bp * Tp * 4 + Bp * 4 + 4),
    )(xp, tp, validp)
    return num[0, 0] / den


def differential_spectral_loss(x, target, length=None, *, tile_t=512):
    """JAX/Pallas equivalent of DifferentailSpectralLoss(loss_func=masked L1).

    x, target: (B, T) float; length: (B,) int or None. Returns scalar f32.
    Note: for genuinely tiny inputs a pure-jnp fallback would beat the kernel
    launch overhead; kept on the kernel path here so the Pallas code is
    always exercised.
    """
    x = jnp.asarray(x, jnp.float32)
    target = jnp.asarray(target, jnp.float32)
    B, T = x.shape
    if length is None:
        length = jnp.full((B,), T, dtype=jnp.int32)
    length = jnp.asarray(length, jnp.int32).reshape(B)
    return _diff_spectral_loss_impl(x, target, length, tile_t=int(tile_t))


def _reference(x, target, length=None):
    x = jnp.asarray(x, jnp.float32)
    target = jnp.asarray(target, jnp.float32)
    x_diff = x[:, 1:] - x[:, :-1]
    t_diff = target[:, 1:] - target[:, :-1]
    err = jnp.abs(x_diff - t_diff)
    if length is None:
        return jnp.mean(err)
    tm1 = err.shape[1]
    col = jnp.arange(tm1)[None, :]
    mask = (col < (length[:, None] - 1)).astype(jnp.float32)
    return jnp.sum(err * mask) / jnp.sum(mask)


if __name__ == "__main__":
    key = jax.random.PRNGKey(0)
    k1, k2, k3, k4 = jax.random.split(key, 4)

    # Case 1: tiny shapes matching the module's B x T contract.
    B, T = 2, 16
    x = jax.random.normal(k1, (B, T), dtype=jnp.float32)
    target = jax.random.normal(k2, (B, T), dtype=jnp.float32)
    length = jnp.array([16, 10], dtype=jnp.int32)

    loss_masked = differential_spectral_loss(x, target, length)
    jax.block_until_ready(loss_masked)
    ref_masked = _reference(x, target, length)

    loss_full = differential_spectral_loss(x, target, None)
    jax.block_until_ready(loss_full)
    ref_full = _reference(x, target, None)

    # Case 2: multi-tile time axis (exercises the cross-tile carry, batch/time
    # padding and the tiled accumulator path).
    B2, T2 = 3, 1200
    x2 = jax.random.normal(k3, (B2, T2), dtype=jnp.float32)
    t2 = jax.random.normal(k4, (B2, T2), dtype=jnp.float32)
    len2 = jnp.array([1200, 700, 1], dtype=jnp.int32)

    loss_big = differential_spectral_loss(x2, t2, len2, tile_t=512)
    jax.block_until_ready(loss_big)
    ref_big = _reference(x2, t2, len2)

    assert jnp.allclose(loss_masked, ref_masked, atol=1e-5, rtol=1e-4), (
        loss_masked, ref_masked)
    assert jnp.allclose(loss_full, ref_full, atol=1e-5, rtol=1e-4), (
        loss_full, ref_full)
    assert jnp.allclose(loss_big, ref_big, atol=1e-5, rtol=1e-4), (
        loss_big, ref_big)
    print("KERNEL_OK")
</pallas_src>

<mosaic_0001>
module attributes {stable_mosaic.version = 11 : i64} {
  func.func @_diff_spectral_l1_kernel(%arg0: i32, %arg1: memref<8x128xf32, #tpu.memory_space<vmem>>, %arg2: memref<8x128xf32, #tpu.memory_space<vmem>>, %arg3: memref<8x1xi32, #tpu.memory_space<vmem>>, %arg4: memref<1x1xf32, #tpu.memory_space<smem>>, %arg5: memref<8x1xf32, #tpu.memory_space<vmem>>) attributes {dimension_semantics = [#tpu.dimension_semantics<arbitrary>], iteration_bounds = array<i64: 1>, scalar_prefetch = 0 : i64, scratch_operands = 1 : i64, tpu.core_type = #tpu.core_type<tc>, window_params = [{transform_indices = @transform_0, window_bounds = array<i64: 8, 128>}, {transform_indices = @transform_1, window_bounds = array<i64: 8, 128>}, {pipeline_mode = #tpu.pipeline_mode<synchronous>, transform_indices = @transform_2, window_bounds = array<i64: 8, 1>}, {transform_indices = @transform_3, window_bounds = array<i64: 1, 1>}]} {
    %c0_i32 = arith.constant 0 : i32
    %0 = arith.cmpi eq, %arg0, %c0_i32 : i32
    %1 = arith.extui %0 : i1 to i32
    %c0_i32_0 = arith.constant 0 : i32
    %2 = arith.cmpi ne, %1, %c0_i32_0 : i32
    scf.if %2 {
      %cst_17 = arith.constant 0.000000e+00 : f32
      %c0_18 = arith.constant 0 : index
      %c0_19 = arith.constant 0 : index
      %36 = memref.load %arg4[%c0_18, %c0_19] : memref<1x1xf32, #tpu.memory_space<smem>>
      memref.store %cst_17, %arg4[%c0_18, %c0_19] : memref<1x1xf32, #tpu.memory_space<smem>>
      %cst_20 = arith.constant 0.000000e+00 : f32
      %37 = vector.broadcast %cst_20 : f32 to vector<8x1xf32>
      %c0_21 = arith.constant 0 : index
      %c0_22 = arith.constant 0 : index
      %38 = vector.load %arg5[%c0_21, %c0_22] : memref<8x1xf32, #tpu.memory_space<vmem>>, vector<8x1xf32>
      tpu.vector_store %arg5[%c0_21, %c0_22], %37 {strides = array<i32>} : memref<8x1xf32, #tpu.memory_space<vmem>>, vector<8x1xf32>,
    } else {
    }
    %c0 = arith.constant 0 : index
    %c0_1 = arith.constant 0 : index
    %3 = vector.load %arg1[%c0, %c0_1] : memref<8x128xf32, #tpu.memory_space<vmem>>, vector<8x128xf32>
    %c0_2 = arith.constant 0 : index
    %c0_3 = arith.constant 0 : index
    %4 = vector.load %arg2[%c0_2, %c0_3] : memref<8x128xf32, #tpu.memory_space<vmem>>, vector<8x128xf32>
    %5 = arith.subf %3, %4 : vector<8x128xf32>
    %c1_i32 = arith.constant 1 : i32
    %6 = tpu.dynamic_rotate %5 by %c1_i32 dim 1 : vector<8x128xf32>, i32 -> vector<8x128xf32>
    %7 = tpu.iota {dimensions = array<i32: 1>} : vector<8x128xi32>
    %c0_i32_4 = arith.constant 0 : i32
    %8 = vector.broadcast %c0_i32_4 : i32 to vector<8x128xi32>
    %9 = arith.cmpi eq, %7, %8 : vector<8x128xi32>
    %c0_5 = arith.constant 0 : index
    %c0_6 = arith.constant 0 : index
    %10 = vector.load %arg5[%c0_5, %c0_6] : memref<8x1xf32, #tpu.memory_space<vmem>>, vector<8x1xf32>
    %11 = vector.shape_cast %10 : vector<8x1xf32> to vector<8x1xf32>
    %12 = vector.broadcast %11 : vector<8x1xf32> to vector<8x128xf32>
    %13 = arith.select %9, %12, %6 : vector<8x128xi1>, vector<8x128xf32>
    %c128_i32 = arith.constant 128 : i32
    %14 = arith.muli %arg0, %c128_i32 : i32
    %15 = vector.broadcast %14 : i32 to vector<8x128xi32>
    %16 = arith.addi %7, %15 : vector<8x128xi32>
    %c1_i32_7 = arith.constant 1 : i32
    %17 = vector.broadcast %c1_i32_7 : i32 to vector<8x128xi32>
    %18 = arith.cmpi sge, %16, %17 : vector<8x128xi32>
    %c0_8 = arith.constant 0 : index
    %c0_9 = arith.constant 0 : index
    %19 = vector.load %arg3[%c0_8, %c0_9] : memref<8x1xi32, #tpu.memory_space<vmem>>, vector<8x1xi32>
    %20 = vector.broadcast %19 : vector<8x1xi32> to vector<8x128xi32>
    %21 = arith.cmpi sle, %16, %20 : vector<8x128xi32>
    %22 = arith.andi %18, %21 : vector<8x128xi1>
    %23 = arith.subf %5, %13 : vector<8x128xf32>
    %24 = math.absf %23 : vector<8x128xf32>
    %c0_10 = arith.constant 0 : index
    %c0_11 = arith.constant 0 : index
    %25 = memref.load %arg4[%c0_10, %c0_11] : memref<1x1xf32, #tpu.memory_space<smem>>
    %cst = arith.constant 0.000000e+00 : f32
    %26 = vector.broadcast %cst : f32 to vector<8x128xf32>
    %27 = arith.select %22, %24, %26 : vector<8x128xi1>, vector<8x128xf32>
    %28 = vector.shape_cast %27 : vector<8x128xf32> to vector<1x8x128xf32>
    %cst_12 = arith.constant dense<0.000000e+00> : vector<1xf32>
    %29 = vector.multi_reduction <add>, %28, %cst_12 [1, 2] : vector<1x8x128xf32> to vector<1xf32>
    %30 = vector.shape_cast %29 : vector<1xf32> to vector<1x1x1xf32>
    %31 = vector.extract %30[0, 0, 0] : f32 from vector<1x1x1xf32>
    %32 = arith.addf %25, %31 : f32
    %c0_13 = arith.constant 0 : index
    %c0_14 = arith.constant 0 : index
    %33 = memref.load %arg4[%c0_13, %c0_14] : memref<1x1xf32, #tpu.memory_space<smem>>
    memref.store %32, %arg4[%c0_13, %c0_14] : memref<1x1xf32, #tpu.memory_space<smem>>
    %34 = vector.extract_strided_slice %6 {offsets = [0, 0], sizes = [8, 1], strides = [1, 1]} : vector<8x128xf32> to vector<8x1xf32>
    %c0_15 = arith.constant 0 : index
    %c0_16 = arith.constant 0 : index
    %35 = vector.load %arg5[%c0_15, %c0_16] : memref<8x1xf32, #tpu.memory_space<vmem>>, vector<8x1xf32>
    tpu.vector_store %arg5[%c0_15, %c0_16], %34 {strides = array<i32>} : memref<8x1xf32, #tpu.memory_space<vmem>>, vector<8x1xf32>,
    return
  }
  func.func @transform_0(%arg0: i32) -> (i32, i32) {
    %c0_i32 = arith.constant 0 : i32
    %c0_i32_0 = arith.constant 0 : i32
    return %c0_i32, %arg0 : i32, i32
  }
  func.func @transform_1(%arg0: i32) -> (i32, i32) {
    %c0_i32 = arith.constant 0 : i32
    %c0_i32_0 = arith.constant 0 : i32
    return %c0_i32, %arg0 : i32, i32
  }
  func.func @transform_2(%arg0: i32) -> (i32, i32) {
    %c0_i32 = arith.constant 0 : i32
    %c0_i32_0 = arith.constant 0 : i32
    %c0_i32_1 = arith.constant 0 : i32
    return %c0_i32, %c0_i32_0 : i32, i32
  }
  func.func @transform_3(%arg0: i32) -> (i32, i32) {
    %c0_i32 = arith.constant 0 : i32
    %c0_i32_0 = arith.constant 0 : i32
    %c0_i32_1 = arith.constant 0 : i32
    return %c0_i32, %c0_i32_0 : i32, i32
  }
}

</mosaic_0001>

<llo_original>
// kernel: _diff_spectral_loss_impl.1
$region0: #{_diff_spectral_loss_impl.1}
  #allocation0 [shape = 'u32[]', space=smem, size = 0x4, offset = 0x4, fixed_abs, tag = 'smem constant byte address 0x4 - core index']
  #allocation1 [shape = 'u32[144,128]{1,0:T(1,128)}', space=vmem, size = 0x12000, scoped, tag = 'internal scratch']
  #allocation2 [shape = 'f32[8,1]{1,0:T(8,128)}', space=vmem, size = 0x1000, scoped, tag = 'scratch operand']
  %s0 = inlined_call_operand.vmem [shape: f32[8,128], index: 0, kind: input, shape index: {}]
  %s1 = inlined_call_operand.vmem [shape: f32[8,128], index: 1, kind: input, shape index: {}]
  %s2 = inlined_call_operand.vmem [shape: s32[8,1], index: 2, kind: input, shape index: {}]
  %s3 = inlined_call_operand.hbm [shape: f32[1,1], index: 3, kind: output, shape index: {}]
  %s4 = sld [smem:[#allocation0]]
  $region26: #{_diff_spectral_loss_impl.1} parent=0
    _
  %s6 = ssub.s32 1, %s4
  %s7 = scalar_select 0, %s6, %s4
  $region1: #{_diff_spectral_loss_impl.1} parent=0
    #allocation3 [shape = 'u8[512]{0}', space=smem, size = 0x200, scoped, tag = 'output window, operand 0, single buffered']
    #allocation4 [shape = 's32[1]{0}', space=sflag, size = 0x4, scoped, tag = 'scoped memory for _diff_spectral_loss_impl.1']
    %8 = vsyncpa [#allocation4], 0
    // Predicated region
    $region2: #{_diff_spectral_loss_impl.1} parent=1 // pred_check
      _
    $region3: #{_diff_spectral_loss_impl.1} parent=1 // pred_check_branch
      %10 = sbr.rel (0) target = $region5
    $region4: #{_diff_spectral_loss_impl.1} parent=1 // pred_region
      _
    $region5: #{_diff_spectral_loss_impl.1} parent=1 // pred_fallthru
      _
    // Predicated region
    $region6: #{_diff_spectral_loss_impl.1} parent=1 // pred_check
      _
    $region7: #{_diff_spectral_loss_impl.1} parent=1 // pred_check_branch
      %12 = sbr.rel (0) target = $region9
    $region8: #{_diff_spectral_loss_impl.1} parent=1 // pred_region
      _
    $region9: #{_diff_spectral_loss_impl.1} parent=1 // pred_fallthru
      _
    // Predicated region
    $region10: #{_diff_spectral_loss_impl.1} parent=1 // pred_check
      _
    $region11: #{_diff_spectral_loss_impl.1} parent=1 // pred_check_branch
      %14 = sbr.rel (0) target = $region13
    $region12: #{_diff_spectral_loss_impl.1} parent=1 // pred_region
      _
    $region13: #{_diff_spectral_loss_impl.1} parent=1 // pred_fallthru
      _
    %p15 = scmp.eq.s32.totalorder 0, 0
    // Predicated region
    $region14: #{_diff_spectral_loss_impl.1} parent=1 // pred_check
      %p16 = pneg %p15
    $region15: #{_diff_spectral_loss_impl.1} parent=1 // pred_check_branch
      %18 = sbr.rel (%p16) target = $region17
    $region16: #{_diff_spectral_loss_impl.1} parent=1 // pred_region
      %s19 = scalar_lea.smem [#allocation3], 0
      %20 = sst [smem:[%s19]] 0.0
      %vm21 = vcmask 7168
      %22 = vst.msk [vmem:[#allocation2] sm:$0xff] %vm21, 0.0
    $region17: #{_diff_spectral_loss_impl.1} parent=1 // pred_fallthru
      _
    %v23 = vld [vmem:[%s0] sm:$0xff]
    %v24 = vld [vmem:[%s1] sm:$0xff]
    %v25 = vsub.f32 %v23, %v24
    %26 = vrot.lane.b32.xlu0 %v25, 1
    %v27 = vpop.permute.xlu0 %26
    %v28 = vlaneseq
    %v29 = vand.u32 %v28, 127
    %vm30 = vcmp.eq.s32.totalorder %v29, 0
    %v31 = vld [vmem:[#allocation2] sm:$0xff]
    %33 = vset.pattern.permute.xlu0 0
    %34 = vperm.xlu0 %33, %v31
    %v35 = vpop.permute.xlu0 %34
    %v37 = vsel %vm30, %v35, %v27
    %s38 = smul.u32 0, 128
    %v39 = vstv %s38
    %v40 = vadd.s32 %v29, %v39
    %vm41 = vcmp.ge.s32.totalorder %v40, 1
    %v42 = vld [vmem:[%s2] sm:$0xff]
    %43 = vset.pattern.permute.xlu0 0
    %44 = vperm.xlu0 %43, %v42
    %v45 = vpop.permute.xlu0 %44
    %vm46 = vcmp.le.s32.totalorder %v40, %v45
    %vm47 = vmand %vm41, %vm46
    %v48 = vsub.f32 %v25, %v37
    %v49 = vand.u32 2147483647, %v48
    %s50 = sld [smem:[#allocation3]]
    %v51 = vsel %vm47, %v49, 0.0
    %52 = vadd.xlane.f32.xlu0 %v51
    %v53 = vpop.xlane.xlu0 %52
    %v54 = vrot.slane %v53, 4
    %v55 = vadd.f32 %v53, %v54
    %v56 = vrot.slane %v55, 2
    %v57 = vadd.f32 %v55, %v56
    %v58 = vrot.slane %v57, 1
    %v59 = vadd.f32 %v57, %v58
    %s60 = vtos %v59
    %s61 = sadd.f32 %s50, %s60
    %s62 = scalar_lea.smem [#allocation3], 0
    %63 = sst [smem:[%s62]] %s61
    %vm64 = vcmask 7168
    %65 = vst.msk [vmem:[#allocation2] sm:$0xff] %vm64, %v27
    // Predicated region
    $region18: #{_diff_spectral_loss_impl.1} parent=1 // pred_check
      _
    $region19: #{_diff_spectral_loss_impl.1} parent=1 // pred_check_branch
      %67 = sbr.rel (0) target = $region21
    $region20: #{_diff_spectral_loss_impl.1} parent=1 // pred_region
      %s69 = ssub.s32 16, 16
      %70 = vsyncadd [#allocation4], %s69
      %73 = dma.smem_to_hbm [#allocation3], 16, %s3, [#allocation4]
    $region21: #{_diff_spectral_loss_impl.1} parent=1 // pred_fallthru
      _
    // Predicated region
    $region22: #{_diff_spectral_loss_impl.1} parent=1 // pred_check
      _
    $region23: #{_diff_spectral_loss_impl.1} parent=1 // pred_check_branch
      %75 = sbr.rel (0) target = $region25
    $region24: #{_diff_spectral_loss_impl.1} parent=1 // pred_region
      %76 = dma.done [#allocation4], 16
    $region25: #{_diff_spectral_loss_impl.1} parent=1 // pred_fallthru
      _
    %77 = sfence
    %78 = vsyncpa [#allocation4], 1

</llo_original>
